<compile_context>
chip_gen: v7x
topology: tpu7x:2x2x1
jax: 0.10.0
libtpu: 0.0.40
codegen_flags: <defaults>
</compile_context>

<pallas_src>
import jax
import jax.numpy as jnp
from jax.experimental import pallas as pl
from jax.experimental.pallas import tpu as pltpu


def _silu_ffn_kernel_acc(x_ref, w1t_ref, w2t_ref, o_ref, acc_ref):
    # Used when the output dtype is NOT f32 (needs a separate f32 accumulator).
    # x_ref:   (tm, d_model_p)
    # w1t_ref: (d_model_p, tf)    W1^T chunk
    # w2t_ref: (tf, d_model_p)    W2^T chunk
    # o_ref:   (tm, d_model_p)
    # acc_ref: (tm, d_model_p) f32 persistent accumulator
    j = pl.program_id(1)

    @pl.when(j == 0)
    def _():
        acc_ref[...] = jnp.zeros_like(acc_ref)

    h = jnp.dot(x_ref[...], w1t_ref[...],
                preferred_element_type=jnp.float32)            # (tm, tf) f32 on MXU
    silu = h * jax.nn.sigmoid(h)                               # EUP exp + VPU mul
    acc_ref[...] += jnp.dot(silu.astype(w2t_ref.dtype), w2t_ref[...],
                            preferred_element_type=jnp.float32)

    @pl.when(j == pl.num_programs(1) - 1)
    def _():
        o_ref[...] = acc_ref[...].astype(o_ref.dtype)


def _silu_ffn_kernel_f32out(x_ref, w1t_ref, w2t_ref, o_ref):
    # Output is f32: accumulate directly into the resident output block
    # (its block index ignores j), no extra VMEM scratch needed.
    j = pl.program_id(1)

    @pl.when(j == 0)
    def _():
        o_ref[...] = jnp.zeros_like(o_ref)

    h = jnp.dot(x_ref[...], w1t_ref[...],
                preferred_element_type=jnp.float32)
    silu = h * jax.nn.sigmoid(h)
    o_ref[...] += jnp.dot(silu.astype(w2t_ref.dtype), w2t_ref[...],
                          preferred_element_type=jnp.float32)


def _round_up(v, m):
    return (v + m - 1) // m * m


def _vmem_capacity_bytes():
    try:
        info = pltpu.get_tpu_info()
        cap = getattr(info, "vmem_capacity_bytes", None)
        if cap:
            return int(cap)
    except Exception:
        pass
    return 128 * 1024 * 1024  # v5e/v6e default


def silu_ffn(x, w1, w2, *, tm=None, tf=None, compute_dtype=jnp.bfloat16,
             vmem_limit_bytes=None):
    """SiLU FFN forward:  y = SiLU(x @ W1^T) @ W2^T.

    x:  (..., d_model)
    w1: (d_ff, d_model)   -- PyTorch Linear layout (out_features, in_features)
    w2: (d_model, d_ff)
    compute_dtype: dtype fed to the MXU (default bf16; accumulation stays f32).
                   Pass None to keep the input dtype, jnp.float32 for exactness.
    """
    orig_shape = x.shape
    d_model = orig_shape[-1]
    d_ff = w1.shape[0]
    assert w1.shape == (d_ff, d_model)
    assert w2.shape == (d_model, d_ff)

    out_dtype = x.dtype
    if compute_dtype is not None:
        x = x.astype(compute_dtype)
        w1 = w1.astype(compute_dtype)
        w2 = w2.astype(compute_dtype)
    comp_bytes = jnp.dtype(x.dtype).itemsize

    x2d = x.reshape(-1, d_model)
    M = x2d.shape[0]

    vmem_cap = _vmem_capacity_bytes()
    small_vmem = vmem_cap <= 64 * 1024 * 1024  # v7x-class part

    # ---- tile-size defaults (per-generation) --------------------------------
    if tf is None:
        tf = 256 if small_vmem else 512
    if tm is None:
        tm = 256
        # v5e/v6e large-M bf16: bigger tm halves total W1/W2 HBM traffic.
        if (not small_vmem) and comp_bytes <= 2 and M >= 1024:
            tm = 512
    # Clamp for small problems while keeping (8, 128) alignment.
    tm = min(tm, _round_up(M, 8))
    tf = min(tf, _round_up(d_ff, 128))
    # v7x (2 TCs): make sure the "parallel" M axis has >= 2 tiles.
    if small_vmem and M > 128 and _round_up(M, 8) <= tm:
        tm = max(128, _round_up((M + 1) // 2, 8))

    # Lane-dense output: pad d_model to a multiple of 128.
    d_model_p = _round_up(d_model, 128)
    M_p = _round_up(M, tm)
    d_ff_p = _round_up(d_ff, tf)

    if vmem_limit_bytes is None:
        # Leave the compiler headroom; ~56 MiB on 64 MiB parts, 100 MiB on 128 MiB.
        vmem_limit_bytes = int(max(32 * 1024 * 1024,
                                   min(vmem_cap - 8 * 1024 * 1024,
                                       100 * 1024 * 1024)))

    # ---- padding (exact: SiLU(0) == 0) & weight pre-transpose ---------------
    if M_p != M or d_model_p != d_model:
        x2d = jnp.pad(x2d, ((0, M_p - M), (0, d_model_p - d_model)))
    # Pre-transpose once outside the hot loop so both dots are plain (M,K)x(K,N).
    w1t = w1.T  # (d_model, d_ff)
    w2t = w2.T  # (d_ff, d_model)
    if d_model_p != d_model or d_ff_p != d_ff:
        w1t = jnp.pad(w1t, ((0, d_model_p - d_model), (0, d_ff_p - d_ff)))
        w2t = jnp.pad(w2t, ((0, d_ff_p - d_ff), (0, d_model_p - d_model)))

    grid = (M_p // tm, d_ff_p // tf)

    f32_out = out_dtype == jnp.float32
    kernel = _silu_ffn_kernel_f32out if f32_out else _silu_ffn_kernel_acc
    scratch_shapes = [] if f32_out else [pltpu.VMEM((tm, d_model_p), jnp.float32)]

    out2d = pl.pallas_call(
        kernel,
        out_shape=jax.ShapeDtypeStruct((M_p, d_model_p), out_dtype),
        grid_spec=pltpu.PrefetchScalarGridSpec(
            num_scalar_prefetch=0,
            grid=grid,
            in_specs=[
                pl.BlockSpec((tm, d_model_p), lambda i, j: (i, 0)),   # x rows
                pl.BlockSpec((d_model_p, tf), lambda i, j: (0, j)),   # W1^T chunk
                pl.BlockSpec((tf, d_model_p), lambda i, j: (j, 0)),   # W2^T chunk
            ],
            out_specs=pl.BlockSpec((tm, d_model_p), lambda i, j: (i, 0)),
            scratch_shapes=scratch_shapes,
        ),
        compiler_params=pltpu.CompilerParams(
            dimension_semantics=("parallel", "arbitrary"),
            vmem_limit_bytes=vmem_limit_bytes,
        ),
    )(x2d, w1t, w2t)

    return out2d[:M, :d_model].reshape(orig_shape)


if __name__ == "__main__":
    d_model = 32
    d_ff = 128
    batch, seq = 2, 8

    key = jax.random.PRNGKey(0)
    kx, k1, k2 = jax.random.split(key, 3)
    x = jax.random.normal(kx, (batch, seq, d_model), dtype=jnp.float32)
    # Deterministic synthetic weights (PyTorch Linear shape: (out, in)).
    w1 = jax.random.normal(k1, (d_ff, d_model), dtype=jnp.float32) * (1.0 / d_model) ** 0.5
    w2 = jax.random.normal(k2, (d_model, d_ff), dtype=jnp.float32) * (1.0 / d_ff) ** 0.5

    # Plain-JAX reference.
    h_ref = x @ w1.T
    ref = (h_ref * jax.nn.sigmoid(h_ref)) @ w2.T

    # 1) Exact f32 path (tight tolerance).
    out_f32 = jax.block_until_ready(silu_ffn(x, w1, w2, compute_dtype=jnp.float32))
    assert out_f32.shape == x.shape
    assert jnp.allclose(out_f32, ref, atol=1e-4, rtol=1e-4)

    # 2) Default production path: bf16 MXU inputs, f32 accumulation/output.
    out_bf16c = jax.block_until_ready(silu_ffn(x, w1, w2))
    assert out_bf16c.shape == x.shape
    assert jnp.allclose(out_bf16c, ref, atol=5e-2, rtol=5e-2)

    # 3) bf16 output path (exercises the f32-scratch accumulator kernel).
    out_bf16 = jax.block_until_ready(silu_ffn(x.astype(jnp.bfloat16), w1, w2))
    assert out_bf16.dtype == jnp.bfloat16
    assert jnp.allclose(out_bf16.astype(jnp.float32), ref, atol=8e-2, rtol=8e-2)

    print("KERNEL_OK")
</pallas_src>

<mosaic_0001>
module attributes {stable_mosaic.version = 11 : i64} {
  func.func @_silu_ffn_kernel_f32out(%arg0: i32, %arg1: i32, %arg2: memref<16x128xf32, #tpu.memory_space<vmem>>, %arg3: memref<128x128xf32, #tpu.memory_space<vmem>>, %arg4: memref<128x128xf32, #tpu.memory_space<vmem>>, %arg5: memref<16x128xf32, #tpu.memory_space<vmem>>) attributes {dimension_semantics = [#tpu.dimension_semantics<parallel>, #tpu.dimension_semantics<arbitrary>], iteration_bounds = array<i64: 1, 1>, scalar_prefetch = 0 : i64, scratch_operands = 0 : i64, tpu.core_type = #tpu.core_type<tc>, window_params = [{transform_indices = @transform_0, window_bounds = array<i64: 16, 128>}, {transform_indices = @transform_1, window_bounds = array<i64: 128, 128>}, {transform_indices = @transform_2, window_bounds = array<i64: 128, 128>}, {transform_indices = @transform_3, window_bounds = array<i64: 16, 128>}]} {
    %c0_i32 = arith.constant 0 : i32
    %0 = arith.cmpi eq, %arg1, %c0_i32 : i32
    %1 = arith.extui %0 : i1 to i32
    %c0_i32_0 = arith.constant 0 : i32
    %2 = arith.cmpi ne, %1, %c0_i32_0 : i32
    scf.if %2 {
      %cst_12 = arith.constant 0.000000e+00 : f32
      %17 = vector.broadcast %cst_12 : f32 to vector<16x128xf32>
      %c0_13 = arith.constant 0 : index
      %c0_14 = arith.constant 0 : index
      %18 = vector.load %arg5[%c0_13, %c0_14] : memref<16x128xf32, #tpu.memory_space<vmem>>, vector<16x128xf32>
      tpu.vector_store %arg5[%c0_13, %c0_14], %17 {strides = array<i32>} : memref<16x128xf32, #tpu.memory_space<vmem>>, vector<16x128xf32>,
    } else {
    }
    %c0 = arith.constant 0 : index
    %c0_1 = arith.constant 0 : index
    %3 = vector.load %arg2[%c0, %c0_1] : memref<16x128xf32, #tpu.memory_space<vmem>>, vector<16x128xf32>
    %c0_2 = arith.constant 0 : index
    %c0_3 = arith.constant 0 : index
    %4 = vector.load %arg3[%c0_2, %c0_3] : memref<128x128xf32, #tpu.memory_space<vmem>>, vector<128x128xf32>
    %cst = arith.constant dense<0.000000e+00> : vector<16x128xf32>
    %5 = tpu.matmul %3, %4, %cst {dimension_numbers = #tpu.dot_dimension_numbers<[1], [0], [0], [1], [0, 0, 1, 1], [], []>} : vector<16x128xf32>, vector<128x128xf32>, vector<16x128xf32> -> vector<16x128xf32>
    %6 = arith.negf %5 : vector<16x128xf32>
    %7 = math.exp %6 : vector<16x128xf32>
    %cst_4 = arith.constant 1.000000e+00 : f32
    %8 = vector.broadcast %cst_4 : f32 to vector<16x128xf32>
    %9 = arith.addf %8, %7 : vector<16x128xf32>
    %10 = arith.divf %8, %9 : vector<16x128xf32>
    %11 = arith.mulf %5, %10 : vector<16x128xf32>
    %c0_5 = arith.constant 0 : index
    %c0_6 = arith.constant 0 : index
    %12 = vector.load %arg5[%c0_5, %c0_6] : memref<16x128xf32, #tpu.memory_space<vmem>>, vector<16x128xf32>
    %c0_7 = arith.constant 0 : index
    %c0_8 = arith.constant 0 : index
    %13 = vector.load %arg4[%c0_7, %c0_8] : memref<128x128xf32, #tpu.memory_space<vmem>>, vector<128x128xf32>
    %cst_9 = arith.constant dense<0.000000e+00> : vector<16x128xf32>
    %14 = tpu.matmul %11, %13, %cst_9 {dimension_numbers = #tpu.dot_dimension_numbers<[1], [0], [0], [1], [0, 0, 1, 1], [], []>} : vector<16x128xf32>, vector<128x128xf32>, vector<16x128xf32> -> vector<16x128xf32>
    %15 = arith.addf %12, %14 : vector<16x128xf32>
    %c0_10 = arith.constant 0 : index
    %c0_11 = arith.constant 0 : index
    %16 = vector.load %arg5[%c0_10, %c0_11] : memref<16x128xf32, #tpu.memory_space<vmem>>, vector<16x128xf32>
    tpu.vector_store %arg5[%c0_10, %c0_11], %15 {strides = array<i32>} : memref<16x128xf32, #tpu.memory_space<vmem>>, vector<16x128xf32>,
    return
  }
  func.func @transform_0(%arg0: i32, %arg1: i32) -> (i32, i32) {
    %c0_i32 = arith.constant 0 : i32
    %c0_i32_0 = arith.constant 0 : i32
    return %arg0, %c0_i32 : i32, i32
  }
  func.func @transform_1(%arg0: i32, %arg1: i32) -> (i32, i32) {
    %c0_i32 = arith.constant 0 : i32
    %c0_i32_0 = arith.constant 0 : i32
    return %c0_i32, %arg1 : i32, i32
  }
  func.func @transform_2(%arg0: i32, %arg1: i32) -> (i32, i32) {
    %c0_i32 = arith.constant 0 : i32
    %c0_i32_0 = arith.constant 0 : i32
    return %arg1, %c0_i32 : i32, i32
  }
  func.func @transform_3(%arg0: i32, %arg1: i32) -> (i32, i32) {
    %c0_i32 = arith.constant 0 : i32
    %c0_i32_0 = arith.constant 0 : i32
    return %arg0, %c0_i32 : i32, i32
  }
}

</mosaic_0001>

<llo_original>
// kernel: tpu_custom_call.1
$region0: #{tpu_custom_call.1}
  #allocation0 [shape = 'u32[]', space=smem, size = 0x4, offset = 0x4, fixed_abs, tag = 'smem constant byte address 0x4 - core index']
  #allocation1 [shape = 'u32[144,128]{1,0:T(1,128)}', space=vmem, size = 0x12000, scoped, tag = 'internal scratch']
  %s0 = inlined_call_operand.hbm [shape: f32[16,128], index: 0, kind: input, shape index: {}]
  %s1 = inlined_call_operand.hbm [shape: f32[128,128], index: 1, kind: input, shape index: {}]
  %s2 = inlined_call_operand.hbm [shape: f32[128,128], index: 2, kind: input, shape index: {}]
  %s3 = inlined_call_operand.hbm [shape: f32[16,128], index: 3, kind: output, shape index: {}]
  %s4 = sld [smem:[#allocation0]]
  $region38: #{tpu_custom_call.1} parent=0
    _
  %s6 = ssub.s32 1, %s4
  %s7 = scalar_select 0, %s6, %s4
  $region1: #{tpu_custom_call.1} parent=0
    #allocation2 [shape = 'u8[8192]{0}', space=vmem, size = 0x2000, scoped, tag = 'input window, operand 0, single buffered']
    #allocation3 [shape = 's32[1]{0}', space=sflag, size = 0x4, scoped, tag = 'scoped memory for tpu_custom_call.1']
    #allocation4 [shape = 's32[1]{0}', space=sflag, size = 0x4, scoped, tag = 'scoped memory for tpu_custom_call.1']
    #allocation5 [shape = 'u8[65536]{0}', space=vmem, size = 0x10000, scoped, tag = 'input window, operand 1, single buffered']
    #allocation6 [shape = 's32[1]{0}', space=sflag, size = 0x4, scoped, tag = 'scoped memory for tpu_custom_call.1']
    #allocation7 [shape = 'u8[65536]{0}', space=vmem, size = 0x10000, scoped, tag = 'input window, operand 2, single buffered']
    #allocation8 [shape = 'u8[8192]{0}', space=vmem, size = 0x2000, scoped, tag = 'output window, operand 0, single buffered']
    %8 = vsyncpa [#allocation3], 0
    %9 = vsyncpa [#allocation6], 0
    %10 = vsyncpa [#allocation4], 0
    // Predicated region
    $region2: #{tpu_custom_call.1} parent=1 // pred_check
      _
    $region3: #{tpu_custom_call.1} parent=1 // pred_check_branch
      %12 = sbr.rel (0) target = $region5
    $region4: #{tpu_custom_call.1} parent=1 // pred_region
      %s14 = ssub.s32 256, 256
      %15 = vsyncadd [#allocation3], %s14
      %s16 = sshll.u32 [#allocation2], 4
      %s17 = int_to_ptr.vmem [resolvable:$true] %s16
      %22 = dma.hbm_to_vmem [thread:$0]  %s0, 256, %s17, [#allocation3], 128, 128, 8
    $region5: #{tpu_custom_call.1} parent=1 // pred_fallthru
      _
    // Predicated region
    $region6: #{tpu_custom_call.1} parent=1 // pred_check
      _
    $region7: #{tpu_custom_call.1} parent=1 // pred_check_branch
      %24 = sbr.rel (0) target = $region9
    $region8: #{tpu_custom_call.1} parent=1 // pred_region
      %s26 = ssub.s32 2048, 2048
      %27 = vsyncadd [#allocation6], %s26
      %s28 = sshll.u32 [#allocation5], 4
      %s29 = int_to_ptr.vmem [resolvable:$true] %s28
      %34 = dma.hbm_to_vmem [thread:$0]  %s1, 2048, %s29, [#allocation6], 128, 128, 8
    $region9: #{tpu_custom_call.1} parent=1 // pred_fallthru
      _
    // Predicated region
    $region10: #{tpu_custom_call.1} parent=1 // pred_check
      _
    $region11: #{tpu_custom_call.1} parent=1 // pred_check_branch
      %36 = sbr.rel (0) target = $region13
    $region12: #{tpu_custom_call.1} parent=1 // pred_region
      %s38 = ssub.s32 2048, 2048
      %39 = vsyncadd [#allocation6], %s38
      %s40 = sshll.u32 [#allocation7], 4
      %s41 = int_to_ptr.vmem [resolvable:$true] %s40
      %46 = dma.hbm_to_vmem [thread:$0]  %s2, 2048, %s41, [#allocation6], 128, 128, 8
    $region13: #{tpu_custom_call.1} parent=1 // pred_fallthru
      _
    // Predicated region
    $region14: #{tpu_custom_call.1} parent=1 // pred_check
      _
    $region15: #{tpu_custom_call.1} parent=1 // pred_check_branch
      %48 = sbr.rel (0) target = $region17
    $region16: #{tpu_custom_call.1} parent=1 // pred_region
      %49 = dma.done [#allocation3], 256
    $region17: #{tpu_custom_call.1} parent=1 // pred_fallthru
      _
    // Predicated region
    $region18: #{tpu_custom_call.1} parent=1 // pred_check
      _
    $region19: #{tpu_custom_call.1} parent=1 // pred_check_branch
      %51 = sbr.rel (0) target = $region21
    $region20: #{tpu_custom_call.1} parent=1 // pred_region
      %52 = dma.done [#allocation6], 2048
    $region21: #{tpu_custom_call.1} parent=1 // pred_fallthru
      _
    // Predicated region
    $region22: #{tpu_custom_call.1} parent=1 // pred_check
      _
    $region23: #{tpu_custom_call.1} parent=1 // pred_check_branch
      %54 = sbr.rel (0) target = $region25
    $region24: #{tpu_custom_call.1} parent=1 // pred_region
      %55 = dma.done [#allocation6], 2048
    $region25: #{tpu_custom_call.1} parent=1 // pred_fallthru
      _
    %p56 = scmp.eq.s32.totalorder 0, 0
    // Predicated region
    $region26: #{tpu_custom_call.1} parent=1 // pred_check
      %p57 = pneg %p56
    $region27: #{tpu_custom_call.1} parent=1 // pred_check_branch
      %59 = sbr.rel (%p57) target = $region29
    $region28: #{tpu_custom_call.1} parent=1 // pred_region
      %60 = vst [vmem:[#allocation8] sm:$0xff] 0.0
      %61 = vst [vmem:[#allocation8 + $0x8] sm:$0xff] 0.0
    $region29: #{tpu_custom_call.1} parent=1 // pred_fallthru
      _
    %v62 = vld [vmem:[#allocation2] sm:$0xff]
    %v63 = vld [vmem:[#allocation2 + $0x8] sm:$0xff]
    %v64 = vld [vmem:[#allocation5] sm:$0xff]
    %v65 = vld [vmem:[#allocation5 + $0x8] sm:$0xff]
    %v66 = vld [vmem:[#allocation5 + $0x10] sm:$0xff]
    %v67 = vld [vmem:[#allocation5 + $0x18] sm:$0xff]
    %v68 = vld [vmem:[#allocation5 + $0x20] sm:$0xff]
    %v69 = vld [vmem:[#allocation5 + $0x28] sm:$0xff]
    %v70 = vld [vmem:[#allocation5 + $0x30] sm:$0xff]
    %v71 = vld [vmem:[#allocation5 + $0x38] sm:$0xff]
    %v72 = vld [vmem:[#allocation5 + $0x40] sm:$0xff]
    %v73 = vld [vmem:[#allocation5 + $0x48] sm:$0xff]
    %v74 = vld [vmem:[#allocation5 + $0x50] sm:$0xff]
    %v75 = vld [vmem:[#allocation5 + $0x58] sm:$0xff]
    %v76 = vld [vmem:[#allocation5 + $0x60] sm:$0xff]
    %v77 = vld [vmem:[#allocation5 + $0x68] sm:$0xff]
    %v78 = vld [vmem:[#allocation5 + $0x70] sm:$0xff]
    %v79 = vld [vmem:[#allocation5 + $0x78] sm:$0xff]
    %80 = vmatprep.subr.mxu0 0.0
    %81 = vmatpush1.msra.mxu0 %v64
    %82 = vmatprep.subr.mxu0 0.0
    %83 = vmatpush1.msra.mxu0 %v65
    %84 = vmatprep.subr.mxu0 0.0
    %85 = vmatpush1.msra.mxu0 %v66
    %86 = vmatprep.subr.mxu0 0.0
    %87 = vmatpush1.msra.mxu0 %v67
    %88 = vmatprep.subr.mxu0 0.0
    %89 = vmatpush1.msra.mxu0 %v68
    %90 = vmatprep.subr.mxu0 0.0
    %91 = vmatpush1.msra.mxu0 %v69
    %92 = vmatprep.subr.mxu0 0.0
    %93 = vmatpush1.msra.mxu0 %v70
    %94 = vmatprep.subr.mxu0 0.0
    %95 = vmatpush1.msra.mxu0 %v71
    %96 = vmatprep.subr.mxu0 0.0
    %97 = vmatpush1.msra.mxu0 %v72
    %98 = vmatprep.subr.mxu0 0.0
    %99 = vmatpush1.msra.mxu0 %v73
    %100 = vmatprep.subr.mxu0 0.0
    %101 = vmatpush1.msra.mxu0 %v74
    %102 = vmatprep.subr.mxu0 0.0
    %103 = vmatpush1.msra.mxu0 %v75
    %104 = vmatprep.subr.mxu0 0.0
    %105 = vmatpush1.msra.mxu0 %v76
    %106 = vmatprep.subr.mxu0 0.0
    %107 = vmatpush1.msra.mxu0 %v77
    %108 = vmatprep.subr.mxu0 0.0
    %109 = vmatpush1.msra.mxu0 %v78
    %110 = vmatprep.subr.mxu0 0.0
    %111 = vmatpush1.msra.mxu0 %v79
    %112 = vmatprep.subr.mxu0 0.0
    %113 = vmatpush1.msra.mxu0 0.0
    %114 = vmatprep.subr.mxu0 0.0
    %115 = vmatpush1.msra.mxu0 0.0
    %116 = vmatprep.subr.mxu0 0.0
    %117 = vmatpush1.msra.mxu0 0.0
    %118 = vmatprep.subr.mxu0 0.0
    %119 = vmatpush1.msra.mxu0 0.0
    %120 = vmatprep.subr.mxu0 0.0
    %121 = vmatpush1.msra.mxu0 0.0
    %122 = vmatprep.subr.mxu0 0.0
    %123 = vmatpush1.msra.mxu0 0.0
    %124 = vmatprep.subr.mxu0 0.0
    %125 = vmatpush1.msra.mxu0 0.0
    %126 = vmatprep.subr.mxu0 0.0
    %127 = vmatpush1.msra.mxu0 0.0
    %128 = vmatprep.subr.mxu0 0.0
    %129 = vmatpush1.msra.mxu0 0.0
    %130 = vmatprep.subr.mxu0 0.0
    %131 = vmatpush1.msra.mxu0 0.0
    %132 = vmatprep.subr.mxu0 0.0
    %133 = vmatpush1.msra.mxu0 0.0
    %134 = vmatprep.subr.mxu0 0.0
    %135 = vmatpush1.msra.mxu0 0.0
    %136 = vmatprep.subr.mxu0 0.0
    %137 = vmatpush1.msra.mxu0 0.0
    %138 = vmatprep.subr.mxu0 0.0
    %139 = vmatpush1.msra.mxu0 0.0
    %140 = vmatprep.subr.mxu0 0.0
    %141 = vmatpush1.msra.mxu0 0.0
    %142 = vmatprep.subr.mxu0 0.0
    %143 = vmatpush1.msra.mxu0 0.0
    %144 = vmatprep.mubr.f32.mxu0 0.0
    %145 = vmatmul.mubr.f32.gmra.mrb[0].mxu0 %v62
    %v146 = vpop.f32.mrb[0].mxu0
    %v147 = vadd.f32 0.0, %v146
    %v148 = vpop.f32.mrb[0].mxu0
    %149 = vmatprep.mubr.f32.mxu0 0.0
    %150 = vmatmul.mubr.f32.gmra.mrb[0].mxu0 %v63
    %v151 = vpop.f32.mrb[0].mxu0
    %v152 = vadd.f32 0.0, %v151
    %v153 = vpop.f32.mrb[0].mxu0
    %154 = vdwg.mxu0
    %v155 = vxor.u32 %v147, 2147483648
    %v156 = vxor.u32 %v152, 2147483648
    %v157 = vmul.f32 %v155, 1.442695
    %v158 = vpow.pop %v157
    %v159 = vmul.f32 %v156, 1.442695
    %v160 = vpow.pop %v159
    %v161 = vadd.f32 %v158, 1.0
    %v162 = vadd.f32 %v160, 1.0
    %v163 = vrcp.pop %v161
    %v164 = vmul.f32 1.0, %v163
    %v165 = vrcp.pop %v162
    %v166 = vmul.f32 1.0, %v165
    %v167 = vmul.f32 %v147, %v164
    %v168 = vmul.f32 %v152, %v166
    %v169 = vld [vmem:[#allocation8] sm:$0xff]
    %v170 = vld [vmem:[#allocation8 + $0x8] sm:$0xff]
    %v171 = vld [vmem:[#allocation7] sm:$0xff]
    %v172 = vld [vmem:[#allocation7 + $0x8] sm:$0xff]
    %v173 = vld [vmem:[#allocation7 + $0x10] sm:$0xff]
    %v174 = vld [vmem:[#allocation7 + $0x18] sm:$0xff]
    %v175 = vld [vmem:[#allocation7 + $0x20] sm:$0xff]
    %v176 = vld [vmem:[#allocation7 + $0x28] sm:$0xff]
    %v177 = vld [vmem:[#allocation7 + $0x30] sm:$0xff]
    %v178 = vld [vmem:[#allocation7 + $0x38] sm:$0xff]
    %v179 = vld [vmem:[#allocation7 + $0x40] sm:$0xff]
    %v180 = vld [vmem:[#allocation7 + $0x48] sm:$0xff]
    %v181 = vld [vmem:[#allocation7 + $0x50] sm:$0xff]
    %v182 = vld [vmem:[#allocation7 + $0x58] sm:$0xff]
    %v183 = vld [vmem:[#allocation7 + $0x60] sm:$0xff]
    %v184 = vld [vmem:[#allocation7 + $0x68] sm:$0xff]
    %v185 = vld [vmem:[#allocation7 + $0x70] sm:$0xff]
    %v186 = vld [vmem:[#allocation7 + $0x78] sm:$0xff]
    %187 = vmatprep.subr.mxu0 0.0
    %188 = vmatpush1.msra.mxu0 %v171
    %189 = vmatprep.subr.mxu0 0.0
    %190 = vmatpush1.msra.mxu0 %v172
    %191 = vmatprep.subr.mxu0 0.0
    %192 = vmatpush1.msra.mxu0 %v173
    %193 = vmatprep.subr.mxu0 0.0
    %194 = vmatpush1.msra.mxu0 %v174
    %195 = vmatprep.subr.mxu0 0.0
    %196 = vmatpush1.msra.mxu0 %v175
    %197 = vmatprep.subr.mxu0 0.0
    %198 = vmatpush1.msra.mxu0 %v176
    %199 = vmatprep.subr.mxu0 0.0
    %200 = vmatpush1.msra.mxu0 %v177
    %201 = vmatprep.subr.mxu0 0.0
    %202 = vmatpush1.msra.mxu0 %v178
    %203 = vmatprep.subr.mxu0 0.0
    %204 = vmatpush1.msra.mxu0 %v179
    %205 = vmatprep.subr.mxu0 0.0
    %206 = vmatpush1.msra.mxu0 %v180
    %207 = vmatprep.subr.mxu0 0.0
    %208 = vmatpush1.msra.mxu0 %v181
    %209 = vmatprep.subr.mxu0 0.0
    %210 = vmatpush1.msra.mxu0 %v182
    %211 = vmatprep.subr.mxu0 0.0
    %212 = vmatpush1.msra.mxu0 %v183
    %213 = vmatprep.subr.mxu0 0.0
    %214 = vmatpush1.msra.mxu0 %v184
    %215 = vmatprep.subr.mxu0 0.0
    %216 = vmatpush1.msra.mxu0 %v185
    %217 = vmatprep.subr.mxu0 0.0
    %218 = vmatpush1.msra.mxu0 %v186
    %219 = vmatprep.subr.mxu0 0.0
    %220 = vmatpush1.msra.mxu0 0.0
    %221 = vmatprep.subr.mxu0 0.0
    %222 = vmatpush1.msra.mxu0 0.0
    %223 = vmatprep.subr.mxu0 0.0
    %224 = vmatpush1.msra.mxu0 0.0
    %225 = vmatprep.subr.mxu0 0.0
    %226 = vmatpush1.msra.mxu0 0.0
    %227 = vmatprep.subr.mxu0 0.0
    %228 = vmatpush1.msra.mxu0 0.0
    %229 = vmatprep.subr.mxu0 0.0
    %230 = vmatpush1.msra.mxu0 0.0
    %231 = vmatprep.subr.mxu0 0.0
    %232 = vmatpush1.msra.mxu0 0.0
    %233 = vmatprep.subr.mxu0 0.0
    %234 = vmatpush1.msra.mxu0 0.0
    %235 = vmatprep.subr.mxu0 0.0
    %236 = vmatpush1.msra.mxu0 0.0
    %237 = vmatprep.subr.mxu0 0.0
    %238 = vmatpush1.msra.mxu0 0.0
    %239 = vmatprep.subr.mxu0 0.0
    %240 = vmatpush1.msra.mxu0 0.0
    %241 = vmatprep.subr.mxu0 0.0
    %242 = vmatpush1.msra.mxu0 0.0
    %243 = vmatprep.subr.mxu0 0.0
    %244 = vmatpush1.msra.mxu0 0.0
    %245 = vmatprep.subr.mxu0 0.0
    %246 = vmatpush1.msra.mxu0 0.0
    %247 = vmatprep.subr.mxu0 0.0
    %248 = vmatpush1.msra.mxu0 0.0
    %249 = vmatprep.subr.mxu0 0.0
    %250 = vmatpush1.msra.mxu0 0.0
    %251 = vmatprep.mubr.f32.mxu0 0.0
    %252 = vmatmul.mubr.f32.gmra.mrb[0].mxu0 %v167
    %v253 = vpop.f32.mrb[0].mxu0
    %v254 = vadd.f32 0.0, %v253
    %v255 = vpop.f32.mrb[0].mxu0
    %256 = vmatprep.mubr.f32.mxu0 0.0
    %257 = vmatmul.mubr.f32.gmra.mrb[0].mxu0 %v168
    %v258 = vpop.f32.mrb[0].mxu0
    %v259 = vadd.f32 0.0, %v258
    %v260 = vpop.f32.mrb[0].mxu0
    %261 = vdwg.mxu0
    %v262 = vadd.f32 %v169, %v254
    %v263 = vadd.f32 %v170, %v259
    %264 = vst [vmem:[#allocation8] sm:$0xff] %v262
    %265 = vst [vmem:[#allocation8 + $0x8] sm:$0xff] %v263
    // Predicated region
    $region30: #{tpu_custom_call.1} parent=1 // pred_check
      _
    $region31: #{tpu_custom_call.1} parent=1 // pred_check_branch
      %267 = sbr.rel (0) target = $region33
    $region32: #{tpu_custom_call.1} parent=1 // pred_region
      %s269 = ssub.s32 256, 256
      %270 = vsyncadd [#allocation4], %s269
      %s271 = sshll.u32 [#allocation8], 4
      %s272 = int_to_ptr.vmem [resolvable:$true] %s271
      %277 = dma.vmem_to_hbm [thread:$0]  %s272, 256, %s3, [#allocation4], 128, 128, 8
    $region33: #{tpu_custom_call.1} parent=1 // pred_fallthru
      _
    // Predicated region
    $region34: #{tpu_custom_call.1} parent=1 // pred_check
      _
    $region35: #{tpu_custom_call.1} parent=1 // pred_check_branch
      %279 = sbr.rel (0) target = $region37
    $region36: #{tpu_custom_call.1} parent=1 // pred_region
      %280 = dma.done [#allocation4], 256
    $region37: #{tpu_custom_call.1} parent=1 // pred_fallthru
      _
    %281 = vsyncpa [#allocation3], 1
    %282 = vsyncpa [#allocation6], 1
    %283 = vsyncpa [#allocation4], 1

</llo_original>
